<compile_context>
chip_gen: v7x
topology: tpu7x:2x2x1
jax: 0.10.0
libtpu: 0.0.40
codegen_flags: <defaults>
</compile_context>

<pallas_src>
import functools
import math

import jax
import jax.numpy as jnp
from jax import lax
from jax.experimental import pallas as pl
from jax.experimental.pallas import tpu as pltpu

_LANES = 1024            # lane-dense slab width (multiple of 128)
_MAX_BLOCK_ROWS = 512    # (512, 1024) f32 block = 2 MiB


def _round_up(n, m):
    return ((n + m - 1) // m) * m


def _hash_u32(x):
    """lowbias32 integer hash; uint32 arithmetic wraps mod 2**32 (VPU only)."""
    x = x ^ (x >> jnp.uint32(16))
    x = x * jnp.uint32(0x7FEB352D)
    x = x ^ (x >> jnp.uint32(15))
    x = x * jnp.uint32(0x846CA68B)
    x = x ^ (x >> jnp.uint32(16))
    return x


def _cos_2pi(u):
    """Polynomial approx of cos(2*pi*u), u in [0,1). Max abs err ~1e-3.

    Pure VPU (mul/add/abs/floor) -- no trig on the EUP.
    """
    w = 0.25 - u
    w = w - jnp.floor(w + 0.5)               # wrap angle/(2*pi) to [-0.5, 0.5)
    y = 16.0 * w * (0.5 - jnp.abs(w))        # parabolic sine
    return 0.225 * (y * jnp.abs(y) - y) + y  # refinement


def _noise_kernel(seed_ref, x_ref, o_ref, *, std):
    rows, cols = x_ref.shape                 # static block shape
    row0 = pl.program_id(0) * rows

    # Global flat element index of every element in this tile.
    r = lax.broadcasted_iota(jnp.int32, (rows, cols), 0)
    c = lax.broadcasted_iota(jnp.int32, (rows, cols), 1)
    flat = ((row0 + r) * cols + c).astype(jnp.uint32)

    key = seed_ref[0].astype(jnp.uint32) * jnp.uint32(0x9E3779B9)
    base = flat * jnp.uint32(2)
    b1 = _hash_u32(base ^ key)
    b2 = _hash_u32((base + jnp.uint32(1)) ^ key)

    # 24-bit uniforms: u1 in (0, 1] (safe for log), u2 in [0, 1).
    inv24 = jnp.float32(1.0 / (1 << 24))
    u1 = ((b1 >> jnp.uint32(8)).astype(jnp.int32).astype(jnp.float32) + 1.0) * inv24
    u2 = (b2 >> jnp.uint32(8)).astype(jnp.int32).astype(jnp.float32) * inv24

    # Box-Muller: z ~ N(0, 1)
    radius = jnp.sqrt(-2.0 * jnp.log(u1))
    z = radius * _cos_2pi(u2)

    o_ref[...] = (x_ref[...] + jnp.float32(std) * z).astype(o_ref.dtype)


def noise_forward(x, std, seed=0):
    """Equivalent of Noise(std).forward(x): returns x + N(0, std^2) noise.

    If std <= 0, returns x unchanged (matching the PyTorch module).  Vary
    `seed` across calls to get fresh noise per forward pass.
    """
    if std <= 0:
        return x

    orig_shape = x.shape
    orig_dtype = x.dtype
    total = math.prod(orig_shape)

    # Lane-dense slab [rows, _LANES], padded so the row-block divides evenly.
    rows = pl.cdiv(total, _LANES)
    block_rows = min(_MAX_BLOCK_ROWS, _round_up(rows, 8))
    padded_rows = _round_up(rows, block_rows)
    padded_total = padded_rows * _LANES

    flat = x.reshape(total)
    if padded_total != total:
        flat = jnp.pad(flat, (0, padded_total - total))
    x2 = flat.reshape(padded_rows, _LANES)

    seed_arr = jnp.asarray([seed], dtype=jnp.int32)
    grid = (padded_rows // block_rows,)

    out2 = pl.pallas_call(
        functools.partial(_noise_kernel, std=float(std)),
        out_shape=jax.ShapeDtypeStruct((padded_rows, _LANES), orig_dtype),
        grid=grid,
        in_specs=[
            pl.BlockSpec(memory_space=pltpu.SMEM),                 # seed scalar
            pl.BlockSpec((block_rows, _LANES), lambda i: (i, 0)),  # input tile
        ],
        out_specs=pl.BlockSpec((block_rows, _LANES), lambda i: (i, 0)),
        compiler_params=pltpu.CompilerParams(
            dimension_semantics=("parallel",)),
    )(seed_arr, x2)

    return out2.reshape(padded_total)[:total].reshape(orig_shape)


if __name__ == "__main__":
    key = jax.random.PRNGKey(0)
    # Small NCHW input consistent with the module's usage.
    x = jax.random.normal(key, (2, 4, 16, 16), dtype=jnp.float32)

    std = 0.1
    y = noise_forward(x, std, seed=42)
    y = jax.block_until_ready(y)

    # Shape/dtype preserved, output finite, noise actually added.
    assert y.shape == x.shape and y.dtype == x.dtype
    assert bool(jnp.all(jnp.isfinite(y)))
    assert bool(jnp.any(y != x))

    # Noise statistics roughly match N(0, std^2).
    noise = (y - x).ravel()
    mean = float(jnp.mean(noise))
    sd = float(jnp.std(noise))
    assert abs(mean) < 0.03, mean
    assert abs(sd - std) < 0.03, sd

    # Different seeds give different noise; same seed is reproducible.
    y2 = jax.block_until_ready(noise_forward(x, std, seed=43))
    assert bool(jnp.any(y2 != y))
    y3 = jax.block_until_ready(noise_forward(x, std, seed=42))
    assert bool(jnp.all(y3 == y))

    # std == 0 path returns input untouched.
    y0 = noise_forward(x, 0.0)
    assert bool(jnp.all(y0 == x))

    print("KERNEL_OK")
</pallas_src>

<mosaic_0001>
module attributes {stable_mosaic.version = 11 : i64} {
  func.func @_noise_kernel(%arg0: i32, %arg1: memref<1xi32, #tpu.memory_space<smem>>, %arg2: memref<8x1024xf32, #tpu.memory_space<vmem>>, %arg3: memref<8x1024xf32, #tpu.memory_space<vmem>>) attributes {dimension_semantics = [#tpu.dimension_semantics<parallel>], iteration_bounds = array<i64: 1>, scalar_prefetch = 0 : i64, scratch_operands = 0 : i64, tpu.core_type = #tpu.core_type<tc>, window_params = [{transform_indices = @transform_0, window_bounds = array<i64: 1>}, {transform_indices = @transform_1, window_bounds = array<i64: 8, 1024>}, {transform_indices = @transform_2, window_bounds = array<i64: 8, 1024>}]} {
    %c8_i32 = arith.constant 8 : i32
    %0 = arith.muli %arg0, %c8_i32 : i32
    %1 = tpu.iota {dimensions = array<i32: 0>} : vector<8x1024xi32>
    %2 = tpu.iota {dimensions = array<i32: 1>} : vector<8x1024xi32>
    %3 = vector.broadcast %0 : i32 to vector<8x1024xi32>
    %4 = arith.addi %3, %1 : vector<8x1024xi32>
    %c1024_i32 = arith.constant 1024 : i32
    %5 = vector.broadcast %c1024_i32 : i32 to vector<8x1024xi32>
    %6 = arith.muli %4, %5 : vector<8x1024xi32>
    %7 = arith.addi %6, %2 : vector<8x1024xi32>
    %c0 = arith.constant 0 : index
    %8 = memref.load %arg1[%c0] : memref<1xi32, #tpu.memory_space<smem>>
    %c-1640531527_i32 = arith.constant -1640531527 : i32
    %9 = arith.muli %8, %c-1640531527_i32 : i32
    %c2_i32 = arith.constant 2 : i32
    %10 = vector.broadcast %c2_i32 : i32 to vector<8x1024xi32>
    %11 = arith.muli %7, %10 : vector<8x1024xi32>
    %12 = vector.broadcast %9 : i32 to vector<8x1024xi32>
    %13 = arith.xori %11, %12 : vector<8x1024xi32>
    %c16_i32 = arith.constant 16 : i32
    %14 = vector.broadcast %c16_i32 : i32 to vector<8x1024xi32>
    %15 = arith.shrui %13, %14 : vector<8x1024xi32>
    %16 = arith.xori %13, %15 : vector<8x1024xi32>
    %c2146121005_i32 = arith.constant 2146121005 : i32
    %17 = vector.broadcast %c2146121005_i32 : i32 to vector<8x1024xi32>
    %18 = arith.muli %16, %17 : vector<8x1024xi32>
    %c15_i32 = arith.constant 15 : i32
    %19 = vector.broadcast %c15_i32 : i32 to vector<8x1024xi32>
    %20 = arith.shrui %18, %19 : vector<8x1024xi32>
    %21 = arith.xori %18, %20 : vector<8x1024xi32>
    %c-2073254261_i32 = arith.constant -2073254261 : i32
    %22 = vector.broadcast %c-2073254261_i32 : i32 to vector<8x1024xi32>
    %23 = arith.muli %21, %22 : vector<8x1024xi32>
    %c16_i32_0 = arith.constant 16 : i32
    %24 = vector.broadcast %c16_i32_0 : i32 to vector<8x1024xi32>
    %25 = arith.shrui %23, %24 : vector<8x1024xi32>
    %26 = arith.xori %23, %25 : vector<8x1024xi32>
    %c1_i32 = arith.constant 1 : i32
    %27 = vector.broadcast %c1_i32 : i32 to vector<8x1024xi32>
    %28 = arith.addi %11, %27 : vector<8x1024xi32>
    %29 = vector.broadcast %9 : i32 to vector<8x1024xi32>
    %30 = arith.xori %28, %29 : vector<8x1024xi32>
    %c16_i32_1 = arith.constant 16 : i32
    %31 = vector.broadcast %c16_i32_1 : i32 to vector<8x1024xi32>
    %32 = arith.shrui %30, %31 : vector<8x1024xi32>
    %33 = arith.xori %30, %32 : vector<8x1024xi32>
    %c2146121005_i32_2 = arith.constant 2146121005 : i32
    %34 = vector.broadcast %c2146121005_i32_2 : i32 to vector<8x1024xi32>
    %35 = arith.muli %33, %34 : vector<8x1024xi32>
    %c15_i32_3 = arith.constant 15 : i32
    %36 = vector.broadcast %c15_i32_3 : i32 to vector<8x1024xi32>
    %37 = arith.shrui %35, %36 : vector<8x1024xi32>
    %38 = arith.xori %35, %37 : vector<8x1024xi32>
    %c-2073254261_i32_4 = arith.constant -2073254261 : i32
    %39 = vector.broadcast %c-2073254261_i32_4 : i32 to vector<8x1024xi32>
    %40 = arith.muli %38, %39 : vector<8x1024xi32>
    %c16_i32_5 = arith.constant 16 : i32
    %41 = vector.broadcast %c16_i32_5 : i32 to vector<8x1024xi32>
    %42 = arith.shrui %40, %41 : vector<8x1024xi32>
    %43 = arith.xori %40, %42 : vector<8x1024xi32>
    %c8_i32_6 = arith.constant 8 : i32
    %44 = vector.broadcast %c8_i32_6 : i32 to vector<8x1024xi32>
    %45 = arith.shrui %26, %44 : vector<8x1024xi32>
    %46 = arith.sitofp %45 : vector<8x1024xi32> to vector<8x1024xf32>
    %cst = arith.constant 1.000000e+00 : f32
    %47 = vector.broadcast %cst : f32 to vector<8x1024xf32>
    %48 = arith.addf %46, %47 : vector<8x1024xf32>
    %cst_7 = arith.constant 5.96046448E-8 : f32
    %49 = vector.broadcast %cst_7 : f32 to vector<8x1024xf32>
    %50 = arith.mulf %48, %49 : vector<8x1024xf32>
    %c8_i32_8 = arith.constant 8 : i32
    %51 = vector.broadcast %c8_i32_8 : i32 to vector<8x1024xi32>
    %52 = arith.shrui %43, %51 : vector<8x1024xi32>
    %53 = arith.sitofp %52 : vector<8x1024xi32> to vector<8x1024xf32>
    %cst_9 = arith.constant 5.96046448E-8 : f32
    %54 = vector.broadcast %cst_9 : f32 to vector<8x1024xf32>
    %55 = arith.mulf %53, %54 : vector<8x1024xf32>
    %56 = math.log %50 : vector<8x1024xf32>
    %cst_10 = arith.constant -2.000000e+00 : f32
    %57 = vector.broadcast %cst_10 : f32 to vector<8x1024xf32>
    %58 = arith.mulf %57, %56 : vector<8x1024xf32>
    %59 = math.sqrt %58 : vector<8x1024xf32>
    %cst_11 = arith.constant 2.500000e-01 : f32
    %60 = vector.broadcast %cst_11 : f32 to vector<8x1024xf32>
    %61 = arith.subf %60, %55 : vector<8x1024xf32>
    %cst_12 = arith.constant 5.000000e-01 : f32
    %62 = vector.broadcast %cst_12 : f32 to vector<8x1024xf32>
    %63 = arith.addf %61, %62 : vector<8x1024xf32>
    %64 = math.floor %63 : vector<8x1024xf32>
    %65 = arith.subf %61, %64 : vector<8x1024xf32>
    %cst_13 = arith.constant 1.600000e+01 : f32
    %66 = vector.broadcast %cst_13 : f32 to vector<8x1024xf32>
    %67 = arith.mulf %66, %65 : vector<8x1024xf32>
    %68 = math.absf %65 : vector<8x1024xf32>
    %cst_14 = arith.constant 5.000000e-01 : f32
    %69 = vector.broadcast %cst_14 : f32 to vector<8x1024xf32>
    %70 = arith.subf %69, %68 : vector<8x1024xf32>
    %71 = arith.mulf %67, %70 : vector<8x1024xf32>
    %72 = math.absf %71 : vector<8x1024xf32>
    %73 = arith.mulf %71, %72 : vector<8x1024xf32>
    %74 = arith.subf %73, %71 : vector<8x1024xf32>
    %cst_15 = arith.constant 2.250000e-01 : f32
    %75 = vector.broadcast %cst_15 : f32 to vector<8x1024xf32>
    %76 = arith.mulf %75, %74 : vector<8x1024xf32>
    %77 = arith.addf %76, %71 : vector<8x1024xf32>
    %78 = arith.mulf %59, %77 : vector<8x1024xf32>
    %c0_16 = arith.constant 0 : index
    %c0_17 = arith.constant 0 : index
    %79 = vector.load %arg2[%c0_16, %c0_17] : memref<8x1024xf32, #tpu.memory_space<vmem>>, vector<8x1024xf32>
    %cst_18 = arith.constant 1.000000e-01 : f32
    %80 = vector.broadcast %cst_18 : f32 to vector<8x1024xf32>
    %81 = arith.mulf %80, %78 : vector<8x1024xf32>
    %82 = arith.addf %79, %81 : vector<8x1024xf32>
    %c0_19 = arith.constant 0 : index
    %c0_20 = arith.constant 0 : index
    %83 = vector.load %arg3[%c0_19, %c0_20] : memref<8x1024xf32, #tpu.memory_space<vmem>>, vector<8x1024xf32>
    tpu.vector_store %arg3[%c0_19, %c0_20], %82 {strides = array<i32>} : memref<8x1024xf32, #tpu.memory_space<vmem>>, vector<8x1024xf32>,
    return
  }
  func.func @transform_0(%arg0: i32) -> i32 {
    %c0_i32 = arith.constant 0 : i32
    %c0_i32_0 = arith.constant 0 : i32
    return %c0_i32 : i32
  }
  func.func @transform_1(%arg0: i32) -> (i32, i32) {
    %c0_i32 = arith.constant 0 : i32
    %c0_i32_0 = arith.constant 0 : i32
    return %arg0, %c0_i32 : i32, i32
  }
  func.func @transform_2(%arg0: i32) -> (i32, i32) {
    %c0_i32 = arith.constant 0 : i32
    %c0_i32_0 = arith.constant 0 : i32
    return %arg0, %c0_i32 : i32, i32
  }
}

</mosaic_0001>

<llo_original>
// kernel: tpu_custom_call.1
$region0: #{tpu_custom_call.1}
  #allocation0 [shape = 'u32[]', space=smem, size = 0x4, offset = 0x4, fixed_abs, tag = 'smem constant byte address 0x4 - core index']
  #allocation1 [shape = 'u32[144,128]{1,0:T(1,128)}', space=vmem, size = 0x12000, scoped, tag = 'internal scratch']
  #allocation2 [shape = 's32[1]{0:T(128)S(6)}', space=smem, size = 0x200, scoped, tag = 'scoped memory for tpu_custom_call.1']
  %s0 = inlined_call_operand.<no memory space> [shape: s32[1], index: 0, kind: input, shape index: {}]
  %s1 = inlined_call_operand.hbm [shape: f32[8,1024], index: 1, kind: input, shape index: {}]
  %s2 = inlined_call_operand.hbm [shape: f32[8,1024], index: 2, kind: output, shape index: {}]
  %s3 = sld [smem:[#allocation0]]
  $region22: #{tpu_custom_call.1} parent=0
    _
  %s5 = ssub.s32 1, %s3
  %s6 = scalar_select 0, %s5, %s3
  %7 = sst [smem:[#allocation2]] %s0
  $region1: #{tpu_custom_call.1} parent=0
    #allocation3 [shape = 'u8[32768]{0}', space=vmem, size = 0x8000, scoped, tag = 'input window, operand 1, single buffered']
    #allocation4 [shape = 's32[1]{0}', space=sflag, size = 0x4, scoped, tag = 'scoped memory for tpu_custom_call.1']
    #allocation5 [shape = 's32[1]{0}', space=sflag, size = 0x4, scoped, tag = 'scoped memory for tpu_custom_call.1']
    #allocation6 [shape = 'u8[32768]{0}', space=vmem, size = 0x8000, scoped, tag = 'output window, operand 0, single buffered']
    %8 = vsyncpa [#allocation4], 0
    %9 = vsyncpa [#allocation5], 0
    // Predicated region
    $region2: #{tpu_custom_call.1} parent=1 // pred_check
      _
    $region3: #{tpu_custom_call.1} parent=1 // pred_check_branch
      %11 = sbr.rel (0) target = $region5
    $region4: #{tpu_custom_call.1} parent=1 // pred_region
      _
    $region5: #{tpu_custom_call.1} parent=1 // pred_fallthru
      _
    // Predicated region
    $region6: #{tpu_custom_call.1} parent=1 // pred_check
      _
    $region7: #{tpu_custom_call.1} parent=1 // pred_check_branch
      %13 = sbr.rel (0) target = $region9
    $region8: #{tpu_custom_call.1} parent=1 // pred_region
      %s15 = ssub.s32 1024, 1024
      %16 = vsyncadd [#allocation4], %s15
      %s18 = sshll.u32 [#allocation3], 4
      %s19 = int_to_ptr.vmem [resolvable:$true] %s18
      %21 = dma.hbm_to_vmem [thread:$0]  %s1, 1024, %s19, [#allocation4]
    $region9: #{tpu_custom_call.1} parent=1 // pred_fallthru
      _
    // Predicated region
    $region10: #{tpu_custom_call.1} parent=1 // pred_check
      _
    $region11: #{tpu_custom_call.1} parent=1 // pred_check_branch
      %23 = sbr.rel (0) target = $region13
    $region12: #{tpu_custom_call.1} parent=1 // pred_region
      %24 = dma.done [#allocation4], 1024
    $region13: #{tpu_custom_call.1} parent=1 // pred_fallthru
      _
    %s25 = smul.u32 0, 8
    %v26 = vlaneseq
    %v27 = vshrl.u32 %v26, 7
    %v28 = vlaneseq
    %v29 = vand.u32 %v28, 127
    %v30 = vadd.s32 %v29, 128
    %v31 = vadd.s32 %v29, 256
    %v32 = vadd.s32 %v29, 384
    %v33 = vadd.s32 %v29, 512
    %v34 = vadd.s32 %v29, 640
    %v35 = vadd.s32 %v29, 768
    %v36 = vadd.s32 %v29, 896
    %v37 = vstv %s25
    %v38 = vadd.s32 %v37, %v27
    %v39 = vmul.u32 %v38, 1024
    %v40 = vadd.s32 %v39, %v29
    %v41 = vadd.s32 %v39, %v30
    %v42 = vadd.s32 %v39, %v31
    %v43 = vadd.s32 %v39, %v32
    %v44 = vadd.s32 %v39, %v33
    %v45 = vadd.s32 %v39, %v34
    %v46 = vadd.s32 %v39, %v35
    %v47 = vadd.s32 %v39, %v36
    %s48 = sld [smem:[#allocation2]]
    %s49 = smul.u32 %s48, 2654435769
    %v50 = vmul.u32 %v40, 2
    %v51 = vmul.u32 %v41, 2
    %v52 = vmul.u32 %v42, 2
    %v53 = vmul.u32 %v43, 2
    %v54 = vmul.u32 %v44, 2
    %v55 = vmul.u32 %v45, 2
    %v56 = vmul.u32 %v46, 2
    %v57 = vmul.u32 %v47, 2
    %v58 = vstv %s49
    %v59 = vxor.u32 %v50, %v58
    %v60 = vxor.u32 %v51, %v58
    %v61 = vxor.u32 %v52, %v58
    %v62 = vxor.u32 %v53, %v58
    %v63 = vxor.u32 %v54, %v58
    %v64 = vxor.u32 %v55, %v58
    %v65 = vxor.u32 %v56, %v58
    %v66 = vxor.u32 %v57, %v58
    %v67 = vshrl.u32 %v59, 16
    %v68 = vshrl.u32 %v60, 16
    %v69 = vshrl.u32 %v61, 16
    %v70 = vshrl.u32 %v62, 16
    %v71 = vshrl.u32 %v63, 16
    %v72 = vshrl.u32 %v64, 16
    %v73 = vshrl.u32 %v65, 16
    %v74 = vshrl.u32 %v66, 16
    %v75 = vxor.u32 %v59, %v67
    %v76 = vxor.u32 %v60, %v68
    %v77 = vxor.u32 %v61, %v69
    %v78 = vxor.u32 %v62, %v70
    %v79 = vxor.u32 %v63, %v71
    %v80 = vxor.u32 %v64, %v72
    %v81 = vxor.u32 %v65, %v73
    %v82 = vxor.u32 %v66, %v74
    %v83 = vmul.u32 %v75, 2146121005
    %v84 = vmul.u32 %v76, 2146121005
    %v85 = vmul.u32 %v77, 2146121005
    %v86 = vmul.u32 %v78, 2146121005
    %v87 = vmul.u32 %v79, 2146121005
    %v88 = vmul.u32 %v80, 2146121005
    %v89 = vmul.u32 %v81, 2146121005
    %v90 = vmul.u32 %v82, 2146121005
    %v91 = vshrl.u32 %v83, 15
    %v92 = vshrl.u32 %v84, 15
    %v93 = vshrl.u32 %v85, 15
    %v94 = vshrl.u32 %v86, 15
    %v95 = vshrl.u32 %v87, 15
    %v96 = vshrl.u32 %v88, 15
    %v97 = vshrl.u32 %v89, 15
    %v98 = vshrl.u32 %v90, 15
    %v99 = vxor.u32 %v83, %v91
    %v100 = vxor.u32 %v84, %v92
    %v101 = vxor.u32 %v85, %v93
    %v102 = vxor.u32 %v86, %v94
    %v103 = vxor.u32 %v87, %v95
    %v104 = vxor.u32 %v88, %v96
    %v105 = vxor.u32 %v89, %v97
    %v106 = vxor.u32 %v90, %v98
    %v107 = vmul.u32 %v99, 2221713035
    %v108 = vmul.u32 %v100, 2221713035
    %v109 = vmul.u32 %v101, 2221713035
    %v110 = vmul.u32 %v102, 2221713035
    %v111 = vmul.u32 %v103, 2221713035
    %v112 = vmul.u32 %v104, 2221713035
    %v113 = vmul.u32 %v105, 2221713035
    %v114 = vmul.u32 %v106, 2221713035
    %v115 = vshrl.u32 %v107, 16
    %v116 = vshrl.u32 %v108, 16
    %v117 = vshrl.u32 %v109, 16
    %v118 = vshrl.u32 %v110, 16
    %v119 = vshrl.u32 %v111, 16
    %v120 = vshrl.u32 %v112, 16
    %v121 = vshrl.u32 %v113, 16
    %v122 = vshrl.u32 %v114, 16
    %v123 = vxor.u32 %v107, %v115
    %v124 = vxor.u32 %v108, %v116
    %v125 = vxor.u32 %v109, %v117
    %v126 = vxor.u32 %v110, %v118
    %v127 = vxor.u32 %v111, %v119
    %v128 = vxor.u32 %v112, %v120
    %v129 = vxor.u32 %v113, %v121
    %v130 = vxor.u32 %v114, %v122
    %v131 = vadd.s32 %v50, 1
    %v132 = vadd.s32 %v51, 1
    %v133 = vadd.s32 %v52, 1
    %v134 = vadd.s32 %v53, 1
    %v135 = vadd.s32 %v54, 1
    %v136 = vadd.s32 %v55, 1
    %v137 = vadd.s32 %v56, 1
    %v138 = vadd.s32 %v57, 1
    %v139 = vxor.u32 %v131, %v58
    %v140 = vxor.u32 %v132, %v58
    %v141 = vxor.u32 %v133, %v58
    %v142 = vxor.u32 %v134, %v58
    %v143 = vxor.u32 %v135, %v58
    %v144 = vxor.u32 %v136, %v58
    %v145 = vxor.u32 %v137, %v58
    %v146 = vxor.u32 %v138, %v58
    %v147 = vshrl.u32 %v139, 16
    %v148 = vshrl.u32 %v140, 16
    %v149 = vshrl.u32 %v141, 16
    %v150 = vshrl.u32 %v142, 16
    %v151 = vshrl.u32 %v143, 16
    %v152 = vshrl.u32 %v144, 16
    %v153 = vshrl.u32 %v145, 16
    %v154 = vshrl.u32 %v146, 16
    %v155 = vxor.u32 %v139, %v147
    %v156 = vxor.u32 %v140, %v148
    %v157 = vxor.u32 %v141, %v149
    %v158 = vxor.u32 %v142, %v150
    %v159 = vxor.u32 %v143, %v151
    %v160 = vxor.u32 %v144, %v152
    %v161 = vxor.u32 %v145, %v153
    %v162 = vxor.u32 %v146, %v154
    %v163 = vmul.u32 %v155, 2146121005
    %v164 = vmul.u32 %v156, 2146121005
    %v165 = vmul.u32 %v157, 2146121005
    %v166 = vmul.u32 %v158, 2146121005
    %v167 = vmul.u32 %v159, 2146121005
    %v168 = vmul.u32 %v160, 2146121005
    %v169 = vmul.u32 %v161, 2146121005
    %v170 = vmul.u32 %v162, 2146121005
    %v171 = vshrl.u32 %v163, 15
    %v172 = vshrl.u32 %v164, 15
    %v173 = vshrl.u32 %v165, 15
    %v174 = vshrl.u32 %v166, 15
    %v175 = vshrl.u32 %v167, 15
    %v176 = vshrl.u32 %v168, 15
    %v177 = vshrl.u32 %v169, 15
    %v178 = vshrl.u32 %v170, 15
    %v179 = vxor.u32 %v163, %v171
    %v180 = vxor.u32 %v164, %v172
    %v181 = vxor.u32 %v165, %v173
    %v182 = vxor.u32 %v166, %v174
    %v183 = vxor.u32 %v167, %v175
    %v184 = vxor.u32 %v168, %v176
    %v185 = vxor.u32 %v169, %v177
    %v186 = vxor.u32 %v170, %v178
    %v187 = vmul.u32 %v179, 2221713035
    %v188 = vmul.u32 %v180, 2221713035
    %v189 = vmul.u32 %v181, 2221713035
    %v190 = vmul.u32 %v182, 2221713035
    %v191 = vmul.u32 %v183, 2221713035
    %v192 = vmul.u32 %v184, 2221713035
    %v193 = vmul.u32 %v185, 2221713035
    %v194 = vmul.u32 %v186, 2221713035
    %v195 = vshrl.u32 %v187, 16
    %v196 = vshrl.u32 %v188, 16
    %v197 = vshrl.u32 %v189, 16
    %v198 = vshrl.u32 %v190, 16
    %v199 = vshrl.u32 %v191, 16
    %v200 = vshrl.u32 %v192, 16
    %v201 = vshrl.u32 %v193, 16
    %v202 = vshrl.u32 %v194, 16
    %v203 = vxor.u32 %v187, %v195
    %v204 = vxor.u32 %v188, %v196
    %v205 = vxor.u32 %v189, %v197
    %v206 = vxor.u32 %v190, %v198
    %v207 = vxor.u32 %v191, %v199
    %v208 = vxor.u32 %v192, %v200
    %v209 = vxor.u32 %v193, %v201
    %v210 = vxor.u32 %v194, %v202
    %v211 = vshrl.u32 %v123, 8
    %v212 = vshrl.u32 %v124, 8
    %v213 = vshrl.u32 %v125, 8
    %v214 = vshrl.u32 %v126, 8
    %v215 = vshrl.u32 %v127, 8
    %v216 = vshrl.u32 %v128, 8
    %v217 = vshrl.u32 %v129, 8
    %v218 = vshrl.u32 %v130, 8
    %v219 = vcvt.s32.f32 %v211
    %v220 = vcvt.s32.f32 %v212
    %v221 = vcvt.s32.f32 %v213
    %v222 = vcvt.s32.f32 %v214
    %v223 = vcvt.s32.f32 %v215
    %v224 = vcvt.s32.f32 %v216
    %v225 = vcvt.s32.f32 %v217
    %v226 = vcvt.s32.f32 %v218
    %v227 = vadd.f32 %v219, 1.0
    %v228 = vadd.f32 %v220, 1.0
    %v229 = vadd.f32 %v221, 1.0
    %v230 = vadd.f32 %v222, 1.0
    %v231 = vadd.f32 %v223, 1.0
    %v232 = vadd.f32 %v224, 1.0
    %v233 = vadd.f32 %v225, 1.0
    %v234 = vadd.f32 %v226, 1.0
    %v235 = vmul.f32 %v227, 5.9604645e-08
    %v236 = vmul.f32 %v228, 5.9604645e-08
    %v237 = vmul.f32 %v229, 5.9604645e-08
    %v238 = vmul.f32 %v230, 5.9604645e-08
    %v239 = vmul.f32 %v231, 5.9604645e-08
    %v240 = vmul.f32 %v232, 5.9604645e-08
    %v241 = vmul.f32 %v233, 5.9604645e-08
    %v242 = vmul.f32 %v234, 5.9604645e-08
    %v243 = vshrl.u32 %v203, 8
    %v244 = vshrl.u32 %v204, 8
    %v245 = vshrl.u32 %v205, 8
    %v246 = vshrl.u32 %v206, 8
    %v247 = vshrl.u32 %v207, 8
    %v248 = vshrl.u32 %v208, 8
    %v249 = vshrl.u32 %v209, 8
    %v250 = vshrl.u32 %v210, 8
    %v251 = vcvt.s32.f32 %v243
    %v252 = vcvt.s32.f32 %v244
    %v253 = vcvt.s32.f32 %v245
    %v254 = vcvt.s32.f32 %v246
    %v255 = vcvt.s32.f32 %v247
    %v256 = vcvt.s32.f32 %v248
    %v257 = vcvt.s32.f32 %v249
    %v258 = vcvt.s32.f32 %v250
    %v259 = vmul.f32 %v251, 5.9604645e-08
    %v260 = vmul.f32 %v252, 5.9604645e-08
    %v261 = vmul.f32 %v253, 5.9604645e-08
    %v262 = vmul.f32 %v254, 5.9604645e-08
    %v263 = vmul.f32 %v255, 5.9604645e-08
    %v264 = vmul.f32 %v256, 5.9604645e-08
    %v265 = vmul.f32 %v257, 5.9604645e-08
    %v266 = vmul.f32 %v258, 5.9604645e-08
    %v267 = vlog2.pop %v235
    %v268 = vmul.f32 %v267, 0.6931472
    %v269 = vlog2.pop %v236
    %v270 = vmul.f32 %v269, 0.6931472
    %v271 = vlog2.pop %v237
    %v272 = vmul.f32 %v271, 0.6931472
    %v273 = vlog2.pop %v238
    %v274 = vmul.f32 %v273, 0.6931472
    %v275 = vlog2.pop %v239
    %v276 = vmul.f32 %v275, 0.6931472
    %v277 = vlog2.pop %v240
    %v278 = vmul.f32 %v277, 0.6931472
    %v279 = vlog2.pop %v241
    %v280 = vmul.f32 %v279, 0.6931472
    %v281 = vlog2.pop %v242
    %v282 = vmul.f32 %v281, 0.6931472
    %v283 = vmul.f32 %v268, -2.0
    %v284 = vmul.f32 %v270, -2.0
    %v285 = vmul.f32 %v272, -2.0
    %v286 = vmul.f32 %v274, -2.0
    %v287 = vmul.f32 %v276, -2.0
    %v288 = vmul.f32 %v278, -2.0
    %v289 = vmul.f32 %v280, -2.0
    %v290 = vmul.f32 %v282, -2.0
    %v291 = vrsqrt.pop %v283
    %v292 = vmul.f32 %v283, %v291
    %vm293 = vcmp.eq.f32.partialorder %v283, inf
    %v294 = vsel %vm293, %v283, %v292
    %vm295 = vcmp.eq.f32.partialorder %v283, 0.0
    %v296 = vand.u32 %v283, 2147483648
    %v297 = vsel %vm295, %v296, %v294
    %v298 = vrsqrt.pop %v284
    %v299 = vmul.f32 %v284, %v298
    %vm300 = vcmp.eq.f32.partialorder %v284, inf
    %v301 = vsel %vm300, %v284, %v299
    %vm302 = vcmp.eq.f32.partialorder %v284, 0.0
    %v303 = vand.u32 %v284, 2147483648
    %v304 = vsel %vm302, %v303, %v301
    %v305 = vrsqrt.pop %v285
    %v306 = vmul.f32 %v285, %v305
    %vm307 = vcmp.eq.f32.partialorder %v285, inf
    %v308 = vsel %vm307, %v285, %v306
    %vm309 = vcmp.eq.f32.partialorder %v285, 0.0
    %v310 = vand.u32 %v285, 2147483648
    %v311 = vsel %vm309, %v310, %v308
    %v312 = vrsqrt.pop %v286
    %v313 = vmul.f32 %v286, %v312
    %vm314 = vcmp.eq.f32.partialorder %v286, inf
    %v315 = vsel %vm314, %v286, %v313
    %vm316 = vcmp.eq.f32.partialorder %v286, 0.0
    %v317 = vand.u32 %v286, 2147483648
    %v318 = vsel %vm316, %v317, %v315
    %v319 = vrsqrt.pop %v287
    %v320 = vmul.f32 %v287, %v319
    %vm321 = vcmp.eq.f32.partialorder %v287, inf
    %v322 = vsel %vm321, %v287, %v320
    %vm323 = vcmp.eq.f32.partialorder %v287, 0.0
    %v324 = vand.u32 %v287, 2147483648
    %v325 = vsel %vm323, %v324, %v322
    %v326 = vrsqrt.pop %v288
    %v327 = vmul.f32 %v288, %v326
    %vm328 = vcmp.eq.f32.partialorder %v288, inf
    %v329 = vsel %vm328, %v288, %v327
    %vm330 = vcmp.eq.f32.partialorder %v288, 0.0
    %v331 = vand.u32 %v288, 2147483648
    %v332 = vsel %vm330, %v331, %v329
    %v333 = vrsqrt.pop %v289
    %v334 = vmul.f32 %v289, %v333
    %vm335 = vcmp.eq.f32.partialorder %v289, inf
    %v336 = vsel %vm335, %v289, %v334
    %vm337 = vcmp.eq.f32.partialorder %v289, 0.0
    %v338 = vand.u32 %v289, 2147483648
    %v339 = vsel %vm337, %v338, %v336
    %v340 = vrsqrt.pop %v290
    %v341 = vmul.f32 %v290, %v340
    %vm342 = vcmp.eq.f32.partialorder %v290, inf
    %v343 = vsel %vm342, %v290, %v341
    %vm344 = vcmp.eq.f32.partialorder %v290, 0.0
    %v345 = vand.u32 %v290, 2147483648
    %v346 = vsel %vm344, %v345, %v343
    %v347 = vsub.f32 0.25, %v259
    %v348 = vsub.f32 0.25, %v260
    %v349 = vsub.f32 0.25, %v261
    %v350 = vsub.f32 0.25, %v262
    %v351 = vsub.f32 0.25, %v263
    %v352 = vsub.f32 0.25, %v264
    %v353 = vsub.f32 0.25, %v265
    %v354 = vsub.f32 0.25, %v266
    %v355 = vadd.f32 %v347, 0.5
    %v356 = vadd.f32 %v348, 0.5
    %v357 = vadd.f32 %v349, 0.5
    %v358 = vadd.f32 %v350, 0.5
    %v359 = vadd.f32 %v351, 0.5
    %v360 = vadd.f32 %v352, 0.5
    %v361 = vadd.f32 %v353, 0.5
    %v362 = vadd.f32 %v354, 0.5
    %v363 = vfloor.f32 %v355
    %v364 = vfloor.f32 %v356
    %v365 = vfloor.f32 %v357
    %v366 = vfloor.f32 %v358
    %v367 = vfloor.f32 %v359
    %v368 = vfloor.f32 %v360
    %v369 = vfloor.f32 %v361
    %v370 = vfloor.f32 %v362
    %v371 = vsub.f32 %v347, %v363
    %v372 = vsub.f32 %v348, %v364
    %v373 = vsub.f32 %v349, %v365
    %v374 = vsub.f32 %v350, %v366
    %v375 = vsub.f32 %v351, %v367
    %v376 = vsub.f32 %v352, %v368
    %v377 = vsub.f32 %v353, %v369
    %v378 = vsub.f32 %v354, %v370
    %v379 = vmul.f32 %v371, 16.0
    %v380 = vmul.f32 %v372, 16.0
    %v381 = vmul.f32 %v373, 16.0
    %v382 = vmul.f32 %v374, 16.0
    %v383 = vmul.f32 %v375, 16.0
    %v384 = vmul.f32 %v376, 16.0
    %v385 = vmul.f32 %v377, 16.0
    %v386 = vmul.f32 %v378, 16.0
    %v387 = vand.u32 2147483647, %v371
    %v388 = vand.u32 2147483647, %v372
    %v389 = vand.u32 2147483647, %v373
    %v390 = vand.u32 2147483647, %v374
    %v391 = vand.u32 2147483647, %v375
    %v392 = vand.u32 2147483647, %v376
    %v393 = vand.u32 2147483647, %v377
    %v394 = vand.u32 2147483647, %v378
    %v395 = vsub.f32 0.5, %v387
    %v396 = vsub.f32 0.5, %v388
    %v397 = vsub.f32 0.5, %v389
    %v398 = vsub.f32 0.5, %v390
    %v399 = vsub.f32 0.5, %v391
    %v400 = vsub.f32 0.5, %v392
    %v401 = vsub.f32 0.5, %v393
    %v402 = vsub.f32 0.5, %v394
    %v403 = vmul.f32 %v379, %v395
    %v404 = vmul.f32 %v380, %v396
    %v405 = vmul.f32 %v381, %v397
    %v406 = vmul.f32 %v382, %v398
    %v407 = vmul.f32 %v383, %v399
    %v408 = vmul.f32 %v384, %v400
    %v409 = vmul.f32 %v385, %v401
    %v410 = vmul.f32 %v386, %v402
    %v411 = vand.u32 2147483647, %v403
    %v412 = vand.u32 2147483647, %v404
    %v413 = vand.u32 2147483647, %v405
    %v414 = vand.u32 2147483647, %v406
    %v415 = vand.u32 2147483647, %v407
    %v416 = vand.u32 2147483647, %v408
    %v417 = vand.u32 2147483647, %v409
    %v418 = vand.u32 2147483647, %v410
    %v419 = vmul.f32 %v403, %v411
    %v420 = vmul.f32 %v404, %v412
    %v421 = vmul.f32 %v405, %v413
    %v422 = vmul.f32 %v406, %v414
    %v423 = vmul.f32 %v407, %v415
    %v424 = vmul.f32 %v408, %v416
    %v425 = vmul.f32 %v409, %v417
    %v426 = vmul.f32 %v410, %v418
    %v427 = vsub.f32 %v419, %v403
    %v428 = vsub.f32 %v420, %v404
    %v429 = vsub.f32 %v421, %v405
    %v430 = vsub.f32 %v422, %v406
    %v431 = vsub.f32 %v423, %v407
    %v432 = vsub.f32 %v424, %v408
    %v433 = vsub.f32 %v425, %v409
    %v434 = vsub.f32 %v426, %v410
    %v435 = vmul.f32 %v427, 0.225
    %v436 = vmul.f32 %v428, 0.225
    %v437 = vmul.f32 %v429, 0.225
    %v438 = vmul.f32 %v430, 0.225
    %v439 = vmul.f32 %v431, 0.225
    %v440 = vmul.f32 %v432, 0.225
    %v441 = vmul.f32 %v433, 0.225
    %v442 = vmul.f32 %v434, 0.225
    %v443 = vadd.f32 %v435, %v403
    %v444 = vadd.f32 %v436, %v404
    %v445 = vadd.f32 %v437, %v405
    %v446 = vadd.f32 %v438, %v406
    %v447 = vadd.f32 %v439, %v407
    %v448 = vadd.f32 %v440, %v408
    %v449 = vadd.f32 %v441, %v409
    %v450 = vadd.f32 %v442, %v410
    %v451 = vmul.f32 %v297, %v443
    %v452 = vmul.f32 %v304, %v444
    %v453 = vmul.f32 %v311, %v445
    %v454 = vmul.f32 %v318, %v446
    %v455 = vmul.f32 %v325, %v447
    %v456 = vmul.f32 %v332, %v448
    %v457 = vmul.f32 %v339, %v449
    %v458 = vmul.f32 %v346, %v450
    %v459 = vld [vmem:[#allocation3] sm:$0xff]
    %v460 = vld [vmem:[#allocation3 + $0x8] sm:$0xff]
    %v461 = vld [vmem:[#allocation3 + $0x10] sm:$0xff]
    %v462 = vld [vmem:[#allocation3 + $0x18] sm:$0xff]
    %v463 = vld [vmem:[#allocation3 + $0x20] sm:$0xff]
    %v464 = vld [vmem:[#allocation3 + $0x28] sm:$0xff]
    %v465 = vld [vmem:[#allocation3 + $0x30] sm:$0xff]
    %v466 = vld [vmem:[#allocation3 + $0x38] sm:$0xff]
    %v467 = vmul.f32 %v451, 0.1
    %v468 = vmul.f32 %v452, 0.1
    %v469 = vmul.f32 %v453, 0.1
    %v470 = vmul.f32 %v454, 0.1
    %v471 = vmul.f32 %v455, 0.1
    %v472 = vmul.f32 %v456, 0.1
    %v473 = vmul.f32 %v457, 0.1
    %v474 = vmul.f32 %v458, 0.1
    %v475 = vadd.f32 %v459, %v467
    %v476 = vadd.f32 %v460, %v468
    %v477 = vadd.f32 %v461, %v469
    %v478 = vadd.f32 %v462, %v470
    %v479 = vadd.f32 %v463, %v471
    %v480 = vadd.f32 %v464, %v472
    %v481 = vadd.f32 %v465, %v473
    %v482 = vadd.f32 %v466, %v474
    %483 = vst [vmem:[#allocation6] sm:$0xff] %v475
    %484 = vst [vmem:[#allocation6 + $0x8] sm:$0xff] %v476
    %485 = vst [vmem:[#allocation6 + $0x10] sm:$0xff] %v477
    %486 = vst [vmem:[#allocation6 + $0x18] sm:$0xff] %v478
    %487 = vst [vmem:[#allocation6 + $0x20] sm:$0xff] %v479
    %488 = vst [vmem:[#allocation6 + $0x28] sm:$0xff] %v480
    %489 = vst [vmem:[#allocation6 + $0x30] sm:$0xff] %v481
    %490 = vst [vmem:[#allocation6 + $0x38] sm:$0xff] %v482
    // Predicated region
    $region14: #{tpu_custom_call.1} parent=1 // pred_check
      _
    $region15: #{tpu_custom_call.1} parent=1 // pred_check_branch
      %492 = sbr.rel (0) target = $region17
    $region16: #{tpu_custom_call.1} parent=1 // pred_region
      %s494 = ssub.s32 1024, 1024
      %495 = vsyncadd [#allocation5], %s494
      %s497 = sshll.u32 [#allocation6], 4
      %s498 = int_to_ptr.vmem [resolvable:$true] %s497
      %500 = dma.vmem_to_hbm [thread:$0]  %s498, 1024, %s2, [#allocation5]
    $region17: #{tpu_custom_call.1} parent=1 // pred_fallthru
      _
    // Predicated region
    $region18: #{tpu_custom_call.1} parent=1 // pred_check
      _
    $region19: #{tpu_custom_call.1} parent=1 // pred_check_branch
      %502 = sbr.rel (0) target = $region21
    $region20: #{tpu_custom_call.1} parent=1 // pred_region
      %503 = dma.done [#allocation5], 1024
    $region21: #{tpu_custom_call.1} parent=1 // pred_fallthru
      _
    %504 = vsyncpa [#allocation4], 1
    %505 = vsyncpa [#allocation5], 1

</llo_original>
